<compile_context>
chip_gen: v7x
topology: tpu7x:2x2x1
jax: 0.10.0
libtpu: 0.0.40
codegen_flags: <defaults>
</compile_context>

<pallas_src>
import functools

import jax
import jax.numpy as jnp
from jax import lax
from jax.experimental import pallas as pl
from jax.experimental.pallas import tpu as pltpu

LANE = 128      # TPU lane width: pad feature dims to multiples of this.
ROW_TILE = 128  # Output-row tile (sublane-aligned, lane-dense stores).


def _round_up(v, m):
    return ((v + m - 1) // m) * m


def _pad2d(arr, rows, cols):
    r, c = arr.shape
    return jnp.pad(arr, ((0, rows - r), (0, cols - c)))


# ----------------------------------------------------------------------------
# Fused kernel:  out = A_hat @ (relu((A_hat @ X) @ W1 + b1) @ W2) + b2
# ----------------------------------------------------------------------------
def _fused_gcn_kernel(a_ref, x_ref, w1_ref, b1_ref, w2_ref, b2_ref,
                      o_ref, z_ref, *, tm):
    n_tiles = pl.num_programs(0)

    # --- Layer 1 (+ projection by W2), computed once at grid step 0 and cached
    #     in VMEM scratch across all output-row tiles.  Row-tiled fori_loop
    #     bounds the live range of the f32 temporaries to one (tm, .) tile.
    @pl.when(pl.program_id(0) == 0)
    def _():
        x_v = x_ref[...]          # [Np, Fin_p]  bf16
        w1_v = w1_ref[...]        # [Fin_p, Hid_p] bf16
        w2_v = w2_ref[...]        # [Hid_p, Fout_p] bf16
        b1_v = b1_ref[...]        # [1, Hid_p] f32

        def body(t, carry):
            r0 = pl.multiple_of(t * tm, tm)
            a_t = a_ref[pl.ds(r0, tm), :]                              # [tm, Np]
            ax = jnp.dot(a_t, x_v, preferred_element_type=jnp.float32)  # [tm, Fin_p]
            h = jnp.dot(ax.astype(jnp.bfloat16), w1_v,
                        preferred_element_type=jnp.float32) + b1_v
            h = jnp.maximum(h, 0.0).astype(jnp.bfloat16)                # [tm, Hid_p]
            z_ref[pl.ds(r0, tm), :] = jnp.dot(
                h, w2_v,
                preferred_element_type=jnp.float32).astype(jnp.bfloat16)
            return carry

        lax.fori_loop(0, n_tiles, body, 0, unroll=False)

    # --- Layer-2 aggregation for this tile of output rows:
    #     out[i*tm:(i+1)*tm] = A_hat[rows] @ Z + b2
    row0 = pl.multiple_of(pl.program_id(0) * tm, tm)
    a_rows = a_ref[pl.ds(row0, tm), :]                                  # [tm, Np]
    o_ref[...] = (jnp.dot(a_rows, z_ref[...],
                          preferred_element_type=jnp.float32)
                  + b2_ref[...])


def _vmem_limit_bytes(n_pad, fin_p, hid_p, fout_p, tm):
    bf2, f4 = 2, 4
    est = (2 * n_pad * n_pad * bf2          # A_hat block (worst-case 2 buffers)
           + 2 * n_pad * fin_p * bf2        # X block
           + 2 * fin_p * hid_p * bf2 + 2 * hid_p * f4     # W1, b1
           + 2 * hid_p * fout_p * bf2 + 2 * fout_p * f4   # W2, b2
           + 2 * tm * fout_p * f4           # output tiles
           + n_pad * fout_p * bf2           # Z scratch
           + 4 * tm * max(fin_p, hid_p, fout_p) * f4)     # in-kernel f32 temps
    return min(max(est + (4 << 20), 32 << 20), 128 << 20)


def gcn_fused_forward(a_pad, x_pad, w1_p, b1_p, w2_p, b2_p, *, tm=ROW_TILE):
    n_pad = a_pad.shape[0]
    fin_p = x_pad.shape[1]
    hid_p = w1_p.shape[1]
    fout_p = w2_p.shape[1]
    assert n_pad % tm == 0

    return pl.pallas_call(
        functools.partial(_fused_gcn_kernel, tm=tm),
        out_shape=jax.ShapeDtypeStruct((n_pad, fout_p), jnp.float32),
        grid_spec=pltpu.PrefetchScalarGridSpec(
            num_scalar_prefetch=0,
            grid=(n_pad // tm,),
            in_specs=[
                pl.BlockSpec((n_pad, n_pad), lambda i: (0, 0)),    # A_hat (resident)
                pl.BlockSpec((n_pad, fin_p), lambda i: (0, 0)),    # X     (resident)
                pl.BlockSpec((fin_p, hid_p), lambda i: (0, 0)),    # W1
                pl.BlockSpec((1, hid_p), lambda i: (0, 0)),        # b1
                pl.BlockSpec((hid_p, fout_p), lambda i: (0, 0)),   # W2
                pl.BlockSpec((1, fout_p), lambda i: (0, 0)),       # b2
            ],
            out_specs=pl.BlockSpec((tm, fout_p), lambda i: (i, 0)),
            scratch_shapes=[pltpu.VMEM((n_pad, fout_p), jnp.bfloat16)],
        ),
        compiler_params=pltpu.CompilerParams(
            # The layer-1 result carried in VMEM scratch spans all row tiles,
            # so the row axis must be sequential ("arbitrary").
            dimension_semantics=("arbitrary",),
            vmem_limit_bytes=_vmem_limit_bytes(n_pad, fin_p, hid_p, fout_p, tm),
        ),
    )(a_pad, x_pad, w1_p, b1_p, w2_p, b2_p)


# ----------------------------------------------------------------------------
# Jitted padded forward: pad -> fused kernel -> slice, one dispatch.
# ----------------------------------------------------------------------------
@functools.partial(jax.jit, static_argnames=("out_channels",))
def _gcn_forward(x, a_hat, w1_p, b1_p, w2_p, b2_p, out_channels):
    num_nodes = x.shape[0]
    fin_p = w1_p.shape[0]
    n_pad = _round_up(num_nodes, ROW_TILE)
    a_pad = _pad2d(a_hat.astype(jnp.float32), n_pad, n_pad).astype(jnp.bfloat16)
    x_pad = _pad2d(x.astype(jnp.float32), n_pad, fin_p).astype(jnp.bfloat16)
    out_pad = gcn_fused_forward(a_pad, x_pad, w1_p, b1_p, w2_p, b2_p,
                                tm=ROW_TILE)
    return out_pad[:num_nodes, :out_channels]


# ----------------------------------------------------------------------------
# Glue: normalized adjacency  D^-1/2 (A + I) D^-1/2  (GCNConv semantics).
# Graph-static: build once per graph and reuse (pass via `a_hat=`).
# ----------------------------------------------------------------------------
def build_normalized_adjacency(edge_index, num_nodes):
    src = edge_index[0]
    dst = edge_index[1]
    adj = jnp.zeros((num_nodes, num_nodes), jnp.float32)
    adj = adj.at[dst, src].add(1.0)
    adj = adj + jnp.eye(num_nodes, dtype=jnp.float32)
    deg = jnp.sum(adj, axis=1)
    deg_inv_sqrt = jnp.where(deg > 0, 1.0 / jnp.sqrt(deg), 0.0)
    return adj * deg_inv_sqrt[:, None] * deg_inv_sqrt[None, :]


# ----------------------------------------------------------------------------
# GCN module (conv1 -> ReLU -> conv2), mirrors the PyTorch forward.
# ----------------------------------------------------------------------------
class GCNPallas:
    def __init__(self, in_channels, hidden_channels, out_channels, key):
        self.in_channels = in_channels
        self.hidden_channels = hidden_channels
        self.out_channels = out_channels

        k1, k2 = jax.random.split(key)
        lim1 = (6.0 / (in_channels + hidden_channels)) ** 0.5
        lim2 = (6.0 / (hidden_channels + out_channels)) ** 0.5
        self.w1 = jax.random.uniform(
            k1, (in_channels, hidden_channels), jnp.float32, -lim1, lim1)
        self.b1 = jnp.zeros((hidden_channels,), jnp.float32)
        self.w2 = jax.random.uniform(
            k2, (hidden_channels, out_channels), jnp.float32, -lim2, lim2)
        self.b2 = jnp.zeros((out_channels,), jnp.float32)

        # Lane-padded bf16 weight copies used by the kernel (built once).
        fin_p = _round_up(in_channels, LANE)
        hid_p = _round_up(hidden_channels, LANE)
        fout_p = _round_up(out_channels, LANE)
        self._fin_p, self._hid_p, self._fout_p = fin_p, hid_p, fout_p
        self._w1_p = _pad2d(self.w1, fin_p, hid_p).astype(jnp.bfloat16)
        self._b1_p = _pad2d(self.b1.reshape(1, -1), 1, hid_p)      # f32
        self._w2_p = _pad2d(self.w2, hid_p, fout_p).astype(jnp.bfloat16)
        self._b2_p = _pad2d(self.b2.reshape(1, -1), 1, fout_p)     # f32

    def __call__(self, x, edge_index, *, a_hat=None, debug=False):
        num_nodes = x.shape[0]
        if edge_index.size == 0:   # static shape check, no device sync
            raise ValueError(
                "edge_index is empty. The subgraph might be too small or isolated.")
        if debug:
            # Device->host syncs; keep off the hot path unless debugging.
            ei_max = int(jnp.max(edge_index))
            ei_min = int(jnp.min(edge_index))
            if ei_max >= num_nodes or ei_min < 0:
                raise ValueError(
                    f"edge_index contains out-of-bounds indices: max {ei_max}, "
                    f"min {ei_min}, x.size(0): {num_nodes}")
            print(f"x shape: {x.shape}, edge_index shape: {edge_index.shape}")

        if a_hat is None:
            a_hat = build_normalized_adjacency(edge_index, num_nodes)

        return _gcn_forward(x, a_hat, self._w1_p, self._b1_p,
                            self._w2_p, self._b2_p, self.out_channels)


def gcn_reference(a_hat, x, w1, b1, w2, b2):
    h = jnp.maximum(a_hat @ (x @ w1) + b1, 0.0)
    return a_hat @ (h @ w2) + b2


if __name__ == "__main__":
    key = jax.random.PRNGKey(0)
    k_feat, k_param = jax.random.split(key)

    num_nodes = 16
    in_channels = 8
    hidden_channels = 32
    out_channels = 2

    # Deterministic node features.
    x = jax.random.normal(k_feat, (num_nodes, in_channels), jnp.float32)

    # Deterministic synthetic graph: ring edges in both directions.
    src = jnp.arange(num_nodes, dtype=jnp.int32)
    dst = (src + 1) % num_nodes
    edge_index = jnp.concatenate(
        [jnp.stack([src, dst], axis=0), jnp.stack([dst, src], axis=0)], axis=1)

    model = GCNPallas(in_channels, hidden_channels, out_channels, k_param)

    # Build A_hat once (graph-static) and reuse it for the forward pass.
    a_hat = build_normalized_adjacency(edge_index, num_nodes)
    out = model(x, edge_index, a_hat=a_hat)
    out = jax.block_until_ready(out)

    assert out.shape == (num_nodes, out_channels)
    assert bool(jnp.all(jnp.isfinite(out)))

    # Correctness check against a pure-JAX f32 reference (bf16 MXU tolerance).
    ref = gcn_reference(a_hat, x, model.w1, model.b1, model.w2, model.b2)
    rel_err = float(jnp.max(jnp.abs(out - ref)) / (jnp.max(jnp.abs(ref)) + 1e-6))
    assert rel_err < 5e-2, f"relative error too large: {rel_err}"

    print("KERNEL_OK")
</pallas_src>

<mosaic_0001>
module attributes {stable_mosaic.version = 11 : i64} {
  func.func @_fused_gcn_kernel(%arg0: i32, %arg1: memref<128x128xbf16, #tpu.memory_space<vmem>>, %arg2: memref<128x128xbf16, #tpu.memory_space<vmem>>, %arg3: memref<128x128xbf16, #tpu.memory_space<vmem>>, %arg4: memref<1x128xf32, #tpu.memory_space<vmem>>, %arg5: memref<128x128xbf16, #tpu.memory_space<vmem>>, %arg6: memref<1x128xf32, #tpu.memory_space<vmem>>, %arg7: memref<128x128xf32, #tpu.memory_space<vmem>>, %arg8: memref<128x128xbf16, #tpu.memory_space<vmem>>) attributes {dimension_semantics = [#tpu.dimension_semantics<arbitrary>], iteration_bounds = array<i64: 1>, scalar_prefetch = 0 : i64, scratch_operands = 1 : i64, tpu.core_type = #tpu.core_type<tc>, window_params = [{pipeline_mode = #tpu.pipeline_mode<synchronous>, transform_indices = @transform_0, window_bounds = array<i64: 128, 128>}, {pipeline_mode = #tpu.pipeline_mode<synchronous>, transform_indices = @transform_1, window_bounds = array<i64: 128, 128>}, {pipeline_mode = #tpu.pipeline_mode<synchronous>, transform_indices = @transform_2, window_bounds = array<i64: 128, 128>}, {pipeline_mode = #tpu.pipeline_mode<synchronous>, transform_indices = @transform_3, window_bounds = array<i64: 1, 128>}, {pipeline_mode = #tpu.pipeline_mode<synchronous>, transform_indices = @transform_4, window_bounds = array<i64: 128, 128>}, {pipeline_mode = #tpu.pipeline_mode<synchronous>, transform_indices = @transform_5, window_bounds = array<i64: 1, 128>}, {transform_indices = @transform_6, window_bounds = array<i64: 128, 128>}]} {
    %c0_i32 = arith.constant 0 : i32
    %0 = arith.cmpi eq, %arg0, %c0_i32 : i32
    %1 = arith.extui %0 : i1 to i32
    %c0_i32_0 = arith.constant 0 : i32
    %2 = arith.cmpi ne, %1, %c0_i32_0 : i32
    scf.if %2 {
      %c0_7 = arith.constant 0 : index
      %c0_8 = arith.constant 0 : index
      %13 = vector.load %arg2[%c0_7, %c0_8] : memref<128x128xbf16, #tpu.memory_space<vmem>>, vector<128x128xbf16>
      %c0_9 = arith.constant 0 : index
      %c0_10 = arith.constant 0 : index
      %14 = vector.load %arg3[%c0_9, %c0_10] : memref<128x128xbf16, #tpu.memory_space<vmem>>, vector<128x128xbf16>
      %c0_11 = arith.constant 0 : index
      %c0_12 = arith.constant 0 : index
      %15 = vector.load %arg5[%c0_11, %c0_12] : memref<128x128xbf16, #tpu.memory_space<vmem>>, vector<128x128xbf16>
      %c0_13 = arith.constant 0 : index
      %c0_14 = arith.constant 0 : index
      %16 = vector.load %arg4[%c0_13, %c0_14] : memref<1x128xf32, #tpu.memory_space<vmem>>, vector<1x128xf32>
      %c0_i32_15 = arith.constant 0 : i32
      %c128_i32_16 = arith.constant 128 : i32
      %17 = arith.muli %c0_i32_15, %c128_i32_16 : i32
      %18 = tpu.assume_multiple %17, 128 : i32
      %19 = arith.index_cast %18 : i32 to index
      %c0_17 = arith.constant 0 : index
      %20 = vector.load %arg1[%19, %c0_17] : memref<128x128xbf16, #tpu.memory_space<vmem>>, vector<128x128xbf16>
      %cst_18 = arith.constant dense<0.000000e+00> : vector<128x128xf32>
      %21 = tpu.matmul %20, %13, %cst_18 {dimension_numbers = #tpu.dot_dimension_numbers<[1], [0], [0], [1], [0, 0, 1, 1], [], []>} : vector<128x128xbf16>, vector<128x128xbf16>, vector<128x128xf32> -> vector<128x128xf32>
      %22 = arith.truncf %21 : vector<128x128xf32> to vector<128x128xbf16>
      %cst_19 = arith.constant dense<0.000000e+00> : vector<128x128xf32>
      %23 = tpu.matmul %22, %14, %cst_19 {dimension_numbers = #tpu.dot_dimension_numbers<[1], [0], [0], [1], [0, 0, 1, 1], [], []>} : vector<128x128xbf16>, vector<128x128xbf16>, vector<128x128xf32> -> vector<128x128xf32>
      %24 = vector.broadcast %16 : vector<1x128xf32> to vector<128x128xf32>
      %25 = arith.addf %23, %24 : vector<128x128xf32>
      %cst_20 = arith.constant 0.000000e+00 : f32
      %26 = vector.broadcast %cst_20 : f32 to vector<128x128xf32>
      %27 = arith.maximumf %25, %26 : vector<128x128xf32>
      %28 = arith.truncf %27 : vector<128x128xf32> to vector<128x128xbf16>
      %cst_21 = arith.constant dense<0.000000e+00> : vector<128x128xf32>
      %29 = tpu.matmul %28, %15, %cst_21 {dimension_numbers = #tpu.dot_dimension_numbers<[1], [0], [0], [1], [0, 0, 1, 1], [], []>} : vector<128x128xbf16>, vector<128x128xbf16>, vector<128x128xf32> -> vector<128x128xf32>
      %30 = arith.truncf %29 : vector<128x128xf32> to vector<128x128xbf16>
      %31 = arith.index_cast %18 : i32 to index
      %c0_22 = arith.constant 0 : index
      %32 = vector.load %arg8[%31, %c0_22] : memref<128x128xbf16, #tpu.memory_space<vmem>>, vector<128x128xbf16>
      tpu.vector_store %arg8[%31, %c0_22], %30 {strides = array<i32>} : memref<128x128xbf16, #tpu.memory_space<vmem>>, vector<128x128xbf16>,
      %c1_i32 = arith.constant 1 : i32
    } else {
    }
    %c128_i32 = arith.constant 128 : i32
    %3 = arith.muli %arg0, %c128_i32 : i32
    %4 = tpu.assume_multiple %3, 128 : i32
    %5 = arith.index_cast %4 : i32 to index
    %c0 = arith.constant 0 : index
    %6 = vector.load %arg1[%5, %c0] : memref<128x128xbf16, #tpu.memory_space<vmem>>, vector<128x128xbf16>
    %c0_1 = arith.constant 0 : index
    %c0_2 = arith.constant 0 : index
    %7 = vector.load %arg8[%c0_1, %c0_2] : memref<128x128xbf16, #tpu.memory_space<vmem>>, vector<128x128xbf16>
    %cst = arith.constant dense<0.000000e+00> : vector<128x128xf32>
    %8 = tpu.matmul %6, %7, %cst {dimension_numbers = #tpu.dot_dimension_numbers<[1], [0], [0], [1], [0, 0, 1, 1], [], []>} : vector<128x128xbf16>, vector<128x128xbf16>, vector<128x128xf32> -> vector<128x128xf32>
    %c0_3 = arith.constant 0 : index
    %c0_4 = arith.constant 0 : index
    %9 = vector.load %arg6[%c0_3, %c0_4] : memref<1x128xf32, #tpu.memory_space<vmem>>, vector<1x128xf32>
    %10 = vector.broadcast %9 : vector<1x128xf32> to vector<128x128xf32>
    %11 = arith.addf %8, %10 : vector<128x128xf32>
    %c0_5 = arith.constant 0 : index
    %c0_6 = arith.constant 0 : index
    %12 = vector.load %arg7[%c0_5, %c0_6] : memref<128x128xf32, #tpu.memory_space<vmem>>, vector<128x128xf32>
    tpu.vector_store %arg7[%c0_5, %c0_6], %11 {strides = array<i32>} : memref<128x128xf32, #tpu.memory_space<vmem>>, vector<128x128xf32>,
    return
  }
  func.func @transform_0(%arg0: i32) -> (i32, i32) {
    %c0_i32 = arith.constant 0 : i32
    %c0_i32_0 = arith.constant 0 : i32
    %c0_i32_1 = arith.constant 0 : i32
    return %c0_i32, %c0_i32_0 : i32, i32
  }
  func.func @transform_1(%arg0: i32) -> (i32, i32) {
    %c0_i32 = arith.constant 0 : i32
    %c0_i32_0 = arith.constant 0 : i32
    %c0_i32_1 = arith.constant 0 : i32
    return %c0_i32, %c0_i32_0 : i32, i32
  }
  func.func @transform_2(%arg0: i32) -> (i32, i32) {
    %c0_i32 = arith.constant 0 : i32
    %c0_i32_0 = arith.constant 0 : i32
    %c0_i32_1 = arith.constant 0 : i32
    return %c0_i32, %c0_i32_0 : i32, i32
  }
  func.func @transform_3(%arg0: i32) -> (i32, i32) {
    %c0_i32 = arith.constant 0 : i32
    %c0_i32_0 = arith.constant 0 : i32
    %c0_i32_1 = arith.constant 0 : i32
    return %c0_i32, %c0_i32_0 : i32, i32
  }
  func.func @transform_4(%arg0: i32) -> (i32, i32) {
    %c0_i32 = arith.constant 0 : i32
    %c0_i32_0 = arith.constant 0 : i32
    %c0_i32_1 = arith.constant 0 : i32
    return %c0_i32, %c0_i32_0 : i32, i32
  }
  func.func @transform_5(%arg0: i32) -> (i32, i32) {
    %c0_i32 = arith.constant 0 : i32
    %c0_i32_0 = arith.constant 0 : i32
    %c0_i32_1 = arith.constant 0 : i32
    return %c0_i32, %c0_i32_0 : i32, i32
  }
  func.func @transform_6(%arg0: i32) -> (i32, i32) {
    %c0_i32 = arith.constant 0 : i32
    %c0_i32_0 = arith.constant 0 : i32
    return %arg0, %c0_i32 : i32, i32
  }
}

</mosaic_0001>

<llo_original>
// kernel: _gcn_forward.1
$region0: #{_gcn_forward.1}
  #allocation0 [shape = 'u32[]', space=smem, size = 0x4, offset = 0x4, fixed_abs, tag = 'smem constant byte address 0x4 - core index']
  #allocation1 [shape = 'u32[144,128]{1,0:T(1,128)}', space=vmem, size = 0x12000, scoped, tag = 'internal scratch']
  #allocation2 [shape = 'bf16[128,128]{1,0:T(16,128)(2,1)}', space=vmem, size = 0x8000, scoped, tag = 'scratch operand']
  %s0 = inlined_call_operand.vmem [shape: bf16[128,128], index: 0, kind: input, shape index: {}]
  %s1 = inlined_call_operand.vmem [shape: bf16[128,128], index: 1, kind: input, shape index: {}]
  %s2 = inlined_call_operand.vmem [shape: bf16[128,128], index: 2, kind: input, shape index: {}]
  %s3 = inlined_call_operand.vmem [shape: f32[1,128], index: 3, kind: input, shape index: {}]
  %s4 = inlined_call_operand.vmem [shape: bf16[128,128], index: 4, kind: input, shape index: {}]
  %s5 = inlined_call_operand.vmem [shape: f32[1,128], index: 5, kind: input, shape index: {}]
  %s6 = inlined_call_operand.vmem [shape: f32[128,128], index: 6, kind: output, shape index: {}]
  %s7 = sld [smem:[#allocation0]]
  $region38: #{_gcn_forward.1} parent=0
    _
  %s9 = ssub.s32 1, %s7
  %s10 = scalar_select 0, %s9, %s7
  // Predicated region
  $region2: #{_gcn_forward.1} parent=0 // pred_check
    _
  $region3: #{_gcn_forward.1} parent=0 // pred_check_branch
    %12 = sbr.rel (0) target = $region5
  $region4: #{_gcn_forward.1} parent=0 // pred_region
    _
  $region5: #{_gcn_forward.1} parent=0 // pred_fallthru
    _
  // Predicated region
  $region6: #{_gcn_forward.1} parent=0 // pred_check
    _
  $region7: #{_gcn_forward.1} parent=0 // pred_check_branch
    %14 = sbr.rel (0) target = $region9
  $region8: #{_gcn_forward.1} parent=0 // pred_region
    _
  $region9: #{_gcn_forward.1} parent=0 // pred_fallthru
    _
  // Predicated region
  $region10: #{_gcn_forward.1} parent=0 // pred_check
    _
  $region11: #{_gcn_forward.1} parent=0 // pred_check_branch
    %16 = sbr.rel (0) target = $region13
  $region12: #{_gcn_forward.1} parent=0 // pred_region
    _
  $region13: #{_gcn_forward.1} parent=0 // pred_fallthru
    _
  // Predicated region
  $region14: #{_gcn_forward.1} parent=0 // pred_check
    _
  $region15: #{_gcn_forward.1} parent=0 // pred_check_branch
    %18 = sbr.rel (0) target = $region17
  $region16: #{_gcn_forward.1} parent=0 // pred_region
    _
  $region17: #{_gcn_forward.1} parent=0 // pred_fallthru
    _
  // Predicated region
  $region18: #{_gcn_forward.1} parent=0 // pred_check
    _
  $region19: #{_gcn_forward.1} parent=0 // pred_check_branch
    %20 = sbr.rel (0) target = $region21
  $region20: #{_gcn_forward.1} parent=0 // pred_region
    _
  $region21: #{_gcn_forward.1} parent=0 // pred_fallthru
    _
  // Predicated region
  $region22: #{_gcn_forward.1} parent=0 // pred_check
    _
  $region23: #{_gcn_forward.1} parent=0 // pred_check_branch
    %22 = sbr.rel (0) target = $region25
  $region24: #{_gcn_forward.1} parent=0 // pred_region
    _
  $region25: #{_gcn_forward.1} parent=0 // pred_fallthru
    _
  %p24 = scmp.eq.s32.totalorder 0, 0
  // Predicated region
  $region26: #{_gcn_forward.1} parent=0 // pred_check
    %p25 = pneg %p24
  $region27: #{_gcn_forward.1} parent=0 // pred_check_branch
    %27 = sbr.rel (%p25) target = $region29
  $region28: #{_gcn_forward.1} parent=0 // pred_region
    %v28 = vld [vmem:[%s1] sm:$0xf]
    %v29 = vld [vmem:[%s1 + $0x4] sm:$0xf]
    %v30 = vld [vmem:[%s1 + $0x8] sm:$0xf]
    %v31 = vld [vmem:[%s1 + $0xc] sm:$0xf]
    %v32 = vld [vmem:[%s1 + $0x10] sm:$0xf]
    %v33 = vld [vmem:[%s1 + $0x14] sm:$0xf]
    %v34 = vld [vmem:[%s1 + $0x18] sm:$0xf]
    %v35 = vld [vmem:[%s1 + $0x1c] sm:$0xf]
    %v36 = vld [vmem:[%s1 + $0x20] sm:$0xf]
    %v37 = vld [vmem:[%s1 + $0x24] sm:$0xf]
    %v38 = vld [vmem:[%s1 + $0x28] sm:$0xf]
    %v39 = vld [vmem:[%s1 + $0x2c] sm:$0xf]
    %v40 = vld [vmem:[%s1 + $0x30] sm:$0xf]
    %v41 = vld [vmem:[%s1 + $0x34] sm:$0xf]
    %v42 = vld [vmem:[%s1 + $0x38] sm:$0xf]
    %v43 = vld [vmem:[%s1 + $0x3c] sm:$0xf]
    %v44 = vld [vmem:[%s2] sm:$0xf]
    %v45 = vld [vmem:[%s2 + $0x4] sm:$0xf]
    %v46 = vld [vmem:[%s2 + $0x8] sm:$0xf]
    %v47 = vld [vmem:[%s2 + $0xc] sm:$0xf]
    %v48 = vld [vmem:[%s2 + $0x10] sm:$0xf]
    %v49 = vld [vmem:[%s2 + $0x14] sm:$0xf]
    %v50 = vld [vmem:[%s2 + $0x18] sm:$0xf]
    %v51 = vld [vmem:[%s2 + $0x1c] sm:$0xf]
    %v52 = vld [vmem:[%s2 + $0x20] sm:$0xf]
    %v53 = vld [vmem:[%s2 + $0x24] sm:$0xf]
    %v54 = vld [vmem:[%s2 + $0x28] sm:$0xf]
    %v55 = vld [vmem:[%s2 + $0x2c] sm:$0xf]
    %v56 = vld [vmem:[%s2 + $0x30] sm:$0xf]
    %v57 = vld [vmem:[%s2 + $0x34] sm:$0xf]
    %v58 = vld [vmem:[%s2 + $0x38] sm:$0xf]
    %v59 = vld [vmem:[%s2 + $0x3c] sm:$0xf]
    %v60 = vld [vmem:[%s4] sm:$0xf]
    %v61 = vld [vmem:[%s4 + $0x4] sm:$0xf]
    %v62 = vld [vmem:[%s4 + $0x8] sm:$0xf]
    %v63 = vld [vmem:[%s4 + $0xc] sm:$0xf]
    %v64 = vld [vmem:[%s4 + $0x10] sm:$0xf]
    %v65 = vld [vmem:[%s4 + $0x14] sm:$0xf]
    %v66 = vld [vmem:[%s4 + $0x18] sm:$0xf]
    %v67 = vld [vmem:[%s4 + $0x1c] sm:$0xf]
    %v68 = vld [vmem:[%s4 + $0x20] sm:$0xf]
    %v69 = vld [vmem:[%s4 + $0x24] sm:$0xf]
    %v70 = vld [vmem:[%s4 + $0x28] sm:$0xf]
    %v71 = vld [vmem:[%s4 + $0x2c] sm:$0xf]
    %v72 = vld [vmem:[%s4 + $0x30] sm:$0xf]
    %v73 = vld [vmem:[%s4 + $0x34] sm:$0xf]
    %v74 = vld [vmem:[%s4 + $0x38] sm:$0xf]
    %v75 = vld [vmem:[%s4 + $0x3c] sm:$0xf]
    %v76 = vld [vmem:[%s3] sm:$0x1]
    %v77 = vld [vmem:[%s0] sm:$0xf]
    %v78 = vld [vmem:[%s0 + $0x4] sm:$0xf]
    %v79 = vld [vmem:[%s0 + $0x8] sm:$0xf]
    %v80 = vld [vmem:[%s0 + $0xc] sm:$0xf]
    %v81 = vld [vmem:[%s0 + $0x10] sm:$0xf]
    %v82 = vld [vmem:[%s0 + $0x14] sm:$0xf]
    %v83 = vld [vmem:[%s0 + $0x18] sm:$0xf]
    %v84 = vld [vmem:[%s0 + $0x1c] sm:$0xf]
    %v85 = vld [vmem:[%s0 + $0x20] sm:$0xf]
    %v86 = vld [vmem:[%s0 + $0x24] sm:$0xf]
    %v87 = vld [vmem:[%s0 + $0x28] sm:$0xf]
    %v88 = vld [vmem:[%s0 + $0x2c] sm:$0xf]
    %v89 = vld [vmem:[%s0 + $0x30] sm:$0xf]
    %v90 = vld [vmem:[%s0 + $0x34] sm:$0xf]
    %v91 = vld [vmem:[%s0 + $0x38] sm:$0xf]
    %v92 = vld [vmem:[%s0 + $0x3c] sm:$0xf]
    %v109 = vunpack.c.l.b16 %v77
    %v110 = vunpack.c.l.b16 %v78
    %v111 = vunpack.c.l.b16 %v79
    %v112 = vunpack.c.l.b16 %v80
    %v113 = vunpack.c.l.b16 %v81
    %v114 = vunpack.c.l.b16 %v82
    %v115 = vunpack.c.l.b16 %v83
    %v116 = vunpack.c.l.b16 %v84
    %v117 = vunpack.c.l.b16 %v85
    %v118 = vunpack.c.l.b16 %v86
    %v119 = vunpack.c.l.b16 %v87
    %v120 = vunpack.c.l.b16 %v88
    %v121 = vunpack.c.l.b16 %v89
    %v122 = vunpack.c.l.b16 %v90
    %v123 = vunpack.c.l.b16 %v91
    %v124 = vunpack.c.l.b16 %v92
    %v125 = vpack.c.b16 %v110, %v109
    %v126 = vpack.c.b16 %v112, %v111
    %v127 = vpack.c.b16 %v114, %v113
    %v128 = vpack.c.b16 %v116, %v115
    %v129 = vpack.c.b16 %v118, %v117
    %v130 = vpack.c.b16 %v120, %v119
    %v131 = vpack.c.b16 %v122, %v121
    %v132 = vpack.c.b16 %v124, %v123
    %v157 = vunpack.c.l.b16 %v28
    %v158 = vunpack.c.l.b16 %v29
    %v159 = vunpack.c.l.b16 %v30
    %v160 = vunpack.c.l.b16 %v31
    %v161 = vunpack.c.l.b16 %v32
    %v162 = vunpack.c.l.b16 %v33
    %v163 = vunpack.c.l.b16 %v34
    %v164 = vunpack.c.l.b16 %v35
    %v165 = vunpack.c.l.b16 %v36
    %v166 = vunpack.c.l.b16 %v37
    %v167 = vunpack.c.l.b16 %v38
    %v168 = vunpack.c.l.b16 %v39
    %v169 = vunpack.c.l.b16 %v40
    %v170 = vunpack.c.l.b16 %v41
    %v171 = vunpack.c.l.b16 %v42
    %v172 = vunpack.c.l.b16 %v43
    %v173 = vpack.c.b16 %v158, %v157
    %v174 = vpack.c.b16 %v160, %v159
    %v175 = vpack.c.b16 %v162, %v161
    %v176 = vpack.c.b16 %v164, %v163
    %v177 = vpack.c.b16 %v166, %v165
    %v178 = vpack.c.b16 %v168, %v167
    %v179 = vpack.c.b16 %v170, %v169
    %v180 = vpack.c.b16 %v172, %v171
    %189 = vmatprep.subr.bf16.mxu0 0
    %190 = vmatpush1.bf16.msra.mxu0 %v173
    %191 = vmatprep.subr.bf16.mxu0 0
    %192 = vmatpush1.bf16.msra.mxu0 %v174
    %193 = vmatprep.subr.bf16.mxu0 0
    %194 = vmatpush1.bf16.msra.mxu0 %v175
    %195 = vmatprep.subr.bf16.mxu0 0
    %196 = vmatpush1.bf16.msra.mxu0 %v176
    %197 = vmatprep.subr.bf16.mxu0 0
    %198 = vmatpush1.bf16.msra.mxu0 %v177
    %199 = vmatprep.subr.bf16.mxu0 0
    %200 = vmatpush1.bf16.msra.mxu0 %v178
    %201 = vmatprep.subr.bf16.mxu0 0
    %202 = vmatpush1.bf16.msra.mxu0 %v179
    %203 = vmatprep.subr.bf16.mxu0 0
    %204 = vmatpush1.bf16.msra.mxu0 %v180
    %205 = vmatprep.subr.bf16.mxu0 0
    %206 = vmatpush1.bf16.msra.mxu0 0
    %207 = vmatprep.subr.bf16.mxu0 0
    %208 = vmatpush1.bf16.msra.mxu0 0
    %209 = vmatprep.subr.bf16.mxu0 0
    %210 = vmatpush1.bf16.msra.mxu0 0
    %211 = vmatprep.subr.bf16.mxu0 0
    %212 = vmatpush1.bf16.msra.mxu0 0
    %213 = vmatprep.subr.bf16.mxu0 0
    %214 = vmatpush1.bf16.msra.mxu0 0
    %215 = vmatprep.subr.bf16.mxu0 0
    %216 = vmatpush1.bf16.msra.mxu0 0
    %217 = vmatprep.subr.bf16.mxu0 0
    %218 = vmatpush1.bf16.msra.mxu0 0
    %219 = vmatprep.subr.bf16.mxu0 0
    %220 = vmatpush1.bf16.msra.mxu0 0
    %221 = vmatprep.mubr.bf16.mxu0 0
    %222 = vmatmul.mubr.bf16.gmra.mrb[0].mxu0 %v125
    %v223 = vpop.f32.mrb[0].mxu0
    %v224 = vadd.f32 0.0, %v223
    %v225 = vpop.f32.mrb[0].mxu0
    %v226 = vpop.f32.mrb[0].mxu0
    %v227 = vadd.f32 0.0, %v226
    %v228 = vpop.f32.mrb[0].mxu0
    %229 = vmatprep.mubr.bf16.mxu0 0
    %230 = vmatmul.mubr.bf16.gmra.mrb[0].mxu0 %v126
    %v231 = vpop.f32.mrb[0].mxu0
    %v232 = vadd.f32 0.0, %v231
    %v233 = vpop.f32.mrb[0].mxu0
    %v234 = vpop.f32.mrb[0].mxu0
    %v235 = vadd.f32 0.0, %v234
    %v236 = vpop.f32.mrb[0].mxu0
    %237 = vmatprep.mubr.bf16.mxu0 0
    %238 = vmatmul.mubr.bf16.gmra.mrb[0].mxu0 %v127
    %v239 = vpop.f32.mrb[0].mxu0
    %v240 = vadd.f32 0.0, %v239
    %v241 = vpop.f32.mrb[0].mxu0
    %v242 = vpop.f32.mrb[0].mxu0
    %v243 = vadd.f32 0.0, %v242
    %v244 = vpop.f32.mrb[0].mxu0
    %245 = vmatprep.mubr.bf16.mxu0 0
    %246 = vmatmul.mubr.bf16.gmra.mrb[0].mxu0 %v128
    %v247 = vpop.f32.mrb[0].mxu0
    %v248 = vadd.f32 0.0, %v247
    %v249 = vpop.f32.mrb[0].mxu0
    %v250 = vpop.f32.mrb[0].mxu0
    %v251 = vadd.f32 0.0, %v250
    %v252 = vpop.f32.mrb[0].mxu0
    %253 = vmatprep.mubr.bf16.mxu0 0
    %254 = vmatmul.mubr.bf16.gmra.mrb[0].mxu0 %v129
    %v255 = vpop.f32.mrb[0].mxu0
    %v256 = vadd.f32 0.0, %v255
    %v257 = vpop.f32.mrb[0].mxu0
    %v258 = vpop.f32.mrb[0].mxu0
    %v259 = vadd.f32 0.0, %v258
    %v260 = vpop.f32.mrb[0].mxu0
    %261 = vmatprep.mubr.bf16.mxu0 0
    %262 = vmatmul.mubr.bf16.gmra.mrb[0].mxu0 %v130
    %v263 = vpop.f32.mrb[0].mxu0
    %v264 = vadd.f32 0.0, %v263
    %v265 = vpop.f32.mrb[0].mxu0
    %v266 = vpop.f32.mrb[0].mxu0
    %v267 = vadd.f32 0.0, %v266
    %v268 = vpop.f32.mrb[0].mxu0
    %269 = vmatprep.mubr.bf16.mxu0 0
    %270 = vmatmul.mubr.bf16.gmra.mrb[0].mxu0 %v131
    %v271 = vpop.f32.mrb[0].mxu0
    %v272 = vadd.f32 0.0, %v271
    %v273 = vpop.f32.mrb[0].mxu0
    %v274 = vpop.f32.mrb[0].mxu0
    %v275 = vadd.f32 0.0, %v274
    %v276 = vpop.f32.mrb[0].mxu0
    %277 = vmatprep.mubr.bf16.mxu0 0
    %278 = vmatmul.mubr.bf16.gmra.mrb[0].mxu0 %v132
    %v279 = vpop.f32.mrb[0].mxu0
    %v280 = vadd.f32 0.0, %v279
    %v281 = vpop.f32.mrb[0].mxu0
    %v282 = vpop.f32.mrb[0].mxu0
    %v283 = vadd.f32 0.0, %v282
    %v284 = vpop.f32.mrb[0].mxu0
    %285 = vdwg.mxu0
    %v286 = vpack.c.bf16 %v227, %v224
    %v287 = vpack.c.bf16 %v235, %v232
    %v288 = vpack.c.bf16 %v243, %v240
    %v289 = vpack.c.bf16 %v251, %v248
    %v290 = vpack.c.bf16 %v259, %v256
    %v291 = vpack.c.bf16 %v267, %v264
    %v292 = vpack.c.bf16 %v275, %v272
    %v293 = vpack.c.bf16 %v283, %v280
    %v295 = vlaneseq
    %v296 = vshrl.u32 %v295, 7
    %v297 = vsub.s32 0, %v296
    %v298 = vrot.slane %v76, %v297
    %v316 = vunpack.c.l.b16 %v44
    %v317 = vunpack.c.l.b16 %v45
    %v318 = vunpack.c.l.b16 %v46
    %v319 = vunpack.c.l.b16 %v47
    %v320 = vunpack.c.l.b16 %v48
    %v321 = vunpack.c.l.b16 %v49
    %v322 = vunpack.c.l.b16 %v50
    %v323 = vunpack.c.l.b16 %v51
    %v324 = vunpack.c.l.b16 %v52
    %v325 = vunpack.c.l.b16 %v53
    %v326 = vunpack.c.l.b16 %v54
    %v327 = vunpack.c.l.b16 %v55
    %v328 = vunpack.c.l.b16 %v56
    %v329 = vunpack.c.l.b16 %v57
    %v330 = vunpack.c.l.b16 %v58
    %v331 = vunpack.c.l.b16 %v59
    %v332 = vpack.c.b16 %v317, %v316
    %v333 = vpack.c.b16 %v319, %v318
    %v334 = vpack.c.b16 %v321, %v320
    %v335 = vpack.c.b16 %v323, %v322
    %v336 = vpack.c.b16 %v325, %v324
    %v337 = vpack.c.b16 %v327, %v326
    %v338 = vpack.c.b16 %v329, %v328
    %v339 = vpack.c.b16 %v331, %v330
    %348 = vmatprep.subr.bf16.mxu0 0
    %349 = vmatpush1.bf16.msra.mxu0 %v332
    %350 = vmatprep.subr.bf16.mxu0 0
    %351 = vmatpush1.bf16.msra.mxu0 %v333
    %352 = vmatprep.subr.bf16.mxu0 0
    %353 = vmatpush1.bf16.msra.mxu0 %v334
    %354 = vmatprep.subr.bf16.mxu0 0
    %355 = vmatpush1.bf16.msra.mxu0 %v335
    %356 = vmatprep.subr.bf16.mxu0 0
    %357 = vmatpush1.bf16.msra.mxu0 %v336
    %358 = vmatprep.subr.bf16.mxu0 0
    %359 = vmatpush1.bf16.msra.mxu0 %v337
    %360 = vmatprep.subr.bf16.mxu0 0
    %361 = vmatpush1.bf16.msra.mxu0 %v338
    %362 = vmatprep.subr.bf16.mxu0 0
    %363 = vmatpush1.bf16.msra.mxu0 %v339
    %364 = vmatprep.subr.bf16.mxu0 0
    %365 = vmatpush1.bf16.msra.mxu0 0
    %366 = vmatprep.subr.bf16.mxu0 0
    %367 = vmatpush1.bf16.msra.mxu0 0
    %368 = vmatprep.subr.bf16.mxu0 0
    %369 = vmatpush1.bf16.msra.mxu0 0
    %370 = vmatprep.subr.bf16.mxu0 0
    %371 = vmatpush1.bf16.msra.mxu0 0
    %372 = vmatprep.subr.bf16.mxu0 0
    %373 = vmatpush1.bf16.msra.mxu0 0
    %374 = vmatprep.subr.bf16.mxu0 0
    %375 = vmatpush1.bf16.msra.mxu0 0
    %376 = vmatprep.subr.bf16.mxu0 0
    %377 = vmatpush1.bf16.msra.mxu0 0
    %378 = vmatprep.subr.bf16.mxu0 0
    %379 = vmatpush1.bf16.msra.mxu0 0
    %380 = vmatprep.mubr.bf16.mxu0 0
    %381 = vmatmul.mubr.bf16.gmra.mrb[0].mxu0 %v286
    %v382 = vpop.f32.mrb[0].mxu0
    %v383 = vadd.f32 %v298, %v382
    %v384 = vpop.f32.mrb[0].mxu0
    %v385 = vpop.f32.mrb[0].mxu0
    %v386 = vadd.f32 %v298, %v385
    %v387 = vpop.f32.mrb[0].mxu0
    %388 = vmatprep.mubr.bf16.mxu0 0
    %389 = vmatmul.mubr.bf16.gmra.mrb[0].mxu0 %v287
    %v390 = vpop.f32.mrb[0].mxu0
    %v391 = vadd.f32 %v298, %v390
    %v392 = vpop.f32.mrb[0].mxu0
    %v393 = vpop.f32.mrb[0].mxu0
    %v394 = vadd.f32 %v298, %v393
    %v395 = vpop.f32.mrb[0].mxu0
    %396 = vmatprep.mubr.bf16.mxu0 0
    %397 = vmatmul.mubr.bf16.gmra.mrb[0].mxu0 %v288
    %v398 = vpop.f32.mrb[0].mxu0
    %v399 = vadd.f32 %v298, %v398
    %v400 = vpop.f32.mrb[0].mxu0
    %v401 = vpop.f32.mrb[0].mxu0
    %v402 = vadd.f32 %v298, %v401
    %v403 = vpop.f32.mrb[0].mxu0
    %404 = vmatprep.mubr.bf16.mxu0 0
    %405 = vmatmul.mubr.bf16.gmra.mrb[0].mxu0 %v289
    %v406 = vpop.f32.mrb[0].mxu0
    %v407 = vadd.f32 %v298, %v406
    %v408 = vpop.f32.mrb[0].mxu0
    %v409 = vpop.f32.mrb[0].mxu0
    %v410 = vadd.f32 %v298, %v409
    %v411 = vpop.f32.mrb[0].mxu0
    %412 = vmatprep.mubr.bf16.mxu0 0
    %413 = vmatmul.mubr.bf16.gmra.mrb[0].mxu0 %v290
    %v414 = vpop.f32.mrb[0].mxu0
    %v415 = vadd.f32 %v298, %v414
    %v416 = vpop.f32.mrb[0].mxu0
    %v417 = vpop.f32.mrb[0].mxu0
    %v418 = vadd.f32 %v298, %v417
    %v419 = vpop.f32.mrb[0].mxu0
    %420 = vmatprep.mubr.bf16.mxu0 0
    %421 = vmatmul.mubr.bf16.gmra.mrb[0].mxu0 %v291
    %v422 = vpop.f32.mrb[0].mxu0
    %v423 = vadd.f32 %v298, %v422
    %v424 = vpop.f32.mrb[0].mxu0
    %v425 = vpop.f32.mrb[0].mxu0
    %v426 = vadd.f32 %v298, %v425
    %v427 = vpop.f32.mrb[0].mxu0
    %428 = vmatprep.mubr.bf16.mxu0 0
    %429 = vmatmul.mubr.bf16.gmra.mrb[0].mxu0 %v292
    %v430 = vpop.f32.mrb[0].mxu0
    %v431 = vadd.f32 %v298, %v430
    %v432 = vpop.f32.mrb[0].mxu0
    %v433 = vpop.f32.mrb[0].mxu0
    %v434 = vadd.f32 %v298, %v433
    %v435 = vpop.f32.mrb[0].mxu0
    %436 = vmatprep.mubr.bf16.mxu0 0
    %437 = vmatmul.mubr.bf16.gmra.mrb[0].mxu0 %v293
    %v438 = vpop.f32.mrb[0].mxu0
    %v439 = vadd.f32 %v298, %v438
    %v440 = vpop.f32.mrb[0].mxu0
    %v441 = vpop.f32.mrb[0].mxu0
    %v442 = vadd.f32 %v298, %v441
    %v443 = vpop.f32.mrb[0].mxu0
    %444 = vdwg.mxu0
    %v445 = vmax.f32 %v383, 0.0
    %v446 = vmax.f32 %v386, 0.0
    %v447 = vmax.f32 %v391, 0.0
    %v448 = vmax.f32 %v394, 0.0
    %v449 = vmax.f32 %v399, 0.0
    %v450 = vmax.f32 %v402, 0.0
    %v451 = vmax.f32 %v407, 0.0
    %v452 = vmax.f32 %v410, 0.0
    %v453 = vmax.f32 %v415, 0.0
    %v454 = vmax.f32 %v418, 0.0
    %v455 = vmax.f32 %v423, 0.0
    %v456 = vmax.f32 %v426, 0.0
    %v457 = vmax.f32 %v431, 0.0
    %v458 = vmax.f32 %v434, 0.0
    %v459 = vmax.f32 %v439, 0.0
    %v460 = vmax.f32 %v442, 0.0
    %v461 = vpack.c.bf16 %v446, %v445
    %v462 = vpack.c.bf16 %v448, %v447
    %v463 = vpack.c.bf16 %v450, %v449
    %v464 = vpack.c.bf16 %v452, %v451
    %v465 = vpack.c.bf16 %v454, %v453
    %v466 = vpack.c.bf16 %v456, %v455
    %v467 = vpack.c.bf16 %v458, %v457
    %v468 = vpack.c.bf16 %v460, %v459
    %v485 = vunpack.c.l.b16 %v60
    %v486 = vunpack.c.l.b16 %v61
    %v487 = vunpack.c.l.b16 %v62
    %v488 = vunpack.c.l.b16 %v63
    %v489 = vunpack.c.l.b16 %v64
    %v490 = vunpack.c.l.b16 %v65
    %v491 = vunpack.c.l.b16 %v66
    %v492 = vunpack.c.l.b16 %v67
    %v493 = vunpack.c.l.b16 %v68
    %v494 = vunpack.c.l.b16 %v69
    %v495 = vunpack.c.l.b16 %v70
    %v496 = vunpack.c.l.b16 %v71
    %v497 = vunpack.c.l.b16 %v72
    %v498 = vunpack.c.l.b16 %v73
    %v499 = vunpack.c.l.b16 %v74
    %v500 = vunpack.c.l.b16 %v75
    %v501 = vpack.c.b16 %v486, %v485
    %v502 = vpack.c.b16 %v488, %v487
    %v503 = vpack.c.b16 %v490, %v489
    %v504 = vpack.c.b16 %v492, %v491
    %v505 = vpack.c.b16 %v494, %v493
    %v506 = vpack.c.b16 %v496, %v495
    %v507 = vpack.c.b16 %v498, %v497
    %v508 = vpack.c.b16 %v500, %v499
    %517 = vmatprep.subr.bf16.mxu0 0
    %518 = vmatpush1.bf16.msra.mxu0 %v501
    %519 = vmatprep.subr.bf16.mxu0 0
    %520 = vmatpush1.bf16.msra.mxu0 %v502
    %521 = vmatprep.subr.bf16.mxu0 0
    %522 = vmatpush1.bf16.msra.mxu0 %v503
    %523 = vmatprep.subr.bf16.mxu0 0
    %524 = vmatpush1.bf16.msra.mxu0 %v504
    %525 = vmatprep.subr.bf16.mxu0 0
    %526 = vmatpush1.bf16.msra.mxu0 %v505
    %527 = vmatprep.subr.bf16.mxu0 0
    %528 = vmatpush1.bf16.msra.mxu0 %v506
    %529 = vmatprep.subr.bf16.mxu0 0
    %530 = vmatpush1.bf16.msra.mxu0 %v507
    %531 = vmatprep.subr.bf16.mxu0 0
    %532 = vmatpush1.bf16.msra.mxu0 %v508
    %533 = vmatprep.subr.bf16.mxu0 0
    %534 = vmatpush1.bf16.msra.mxu0 0
    %535 = vmatprep.subr.bf16.mxu0 0
    %536 = vmatpush1.bf16.msra.mxu0 0
    %537 = vmatprep.subr.bf16.mxu0 0
    %538 = vmatpush1.bf16.msra.mxu0 0
    %539 = vmatprep.subr.bf16.mxu0 0
    %540 = vmatpush1.bf16.msra.mxu0 0
    %541 = vmatprep.subr.bf16.mxu0 0
    %542 = vmatpush1.bf16.msra.mxu0 0
    %543 = vmatprep.subr.bf16.mxu0 0
    %544 = vmatpush1.bf16.msra.mxu0 0
    %545 = vmatprep.subr.bf16.mxu0 0
    %546 = vmatpush1.bf16.msra.mxu0 0
    %547 = vmatprep.subr.bf16.mxu0 0
    %548 = vmatpush1.bf16.msra.mxu0 0
    %549 = vmatprep.mubr.bf16.mxu0 0
    %550 = vmatmul.mubr.bf16.gmra.mrb[0].mxu0 %v461
    %v551 = vpop.f32.mrb[0].mxu0
    %v552 = vadd.f32 0.0, %v551
    %v553 = vpop.f32.mrb[0].mxu0
    %v554 = vpop.f32.mrb[0].mxu0
    %v555 = vadd.f32 0.0, %v554
    %v556 = vpop.f32.mrb[0].mxu0
    %557 = vmatprep.mubr.bf16.mxu0 0
    %558 = vmatmul.mubr.bf16.gmra.mrb[0].mxu0 %v462
    %v559 = vpop.f32.mrb[0].mxu0
    %v560 = vadd.f32 0.0, %v559
    %v561 = vpop.f32.mrb[0].mxu0
    %v562 = vpop.f32.mrb[0].mxu0
    %v563 = vadd.f32 0.0, %v562
    %v564 = vpop.f32.mrb[0].mxu0
    %565 = vmatprep.mubr.bf16.mxu0 0
    %566 = vmatmul.mubr.bf16.gmra.mrb[0].mxu0 %v463
    %v567 = vpop.f32.mrb[0].mxu0
    %v568 = vadd.f32 0.0, %v567
    %v569 = vpop.f32.mrb[0].mxu0
    %v570 = vpop.f32.mrb[0].mxu0
    %v571 = vadd.f32 0.0, %v570
    %v572 = vpop.f32.mrb[0].mxu0
    %573 = vmatprep.mubr.bf16.mxu0 0
    %574 = vmatmul.mubr.bf16.gmra.mrb[0].mxu0 %v464
    %v575 = vpop.f32.mrb[0].mxu0
    %v576 = vadd.f32 0.0, %v575
    %v577 = vpop.f32.mrb[0].mxu0
    %v578 = vpop.f32.mrb[0].mxu0
    %v579 = vadd.f32 0.0, %v578
    %v580 = vpop.f32.mrb[0].mxu0
    %581 = vmatprep.mubr.bf16.mxu0 0
    %582 = vmatmul.mubr.bf16.gmra.mrb[0].mxu0 %v465
    %v583 = vpop.f32.mrb[0].mxu0
    %v584 = vadd.f32 0.0, %v583
    %v585 = vpop.f32.mrb[0].mxu0
    %v586 = vpop.f32.mrb[0].mxu0
    %v587 = vadd.f32 0.0, %v586
    %v588 = vpop.f32.mrb[0].mxu0
    %589 = vmatprep.mubr.bf16.mxu0 0
    %590 = vmatmul.mubr.bf16.gmra.mrb[0].mxu0 %v466
    %v591 = vpop.f32.mrb[0].mxu0
    %v592 = vadd.f32 0.0, %v591
    %v593 = vpop.f32.mrb[0].mxu0
    %v594 = vpop.f32.mrb[0].mxu0
    %v595 = vadd.f32 0.0, %v594
    %v596 = vpop.f32.mrb[0].mxu0
    %597 = vmatprep.mubr.bf16.mxu0 0
    %598 = vmatmul.mubr.bf16.gmra.mrb[0].mxu0 %v467
    %v599 = vpop.f32.mrb[0].mxu0
    %v600 = vadd.f32 0.0, %v599
    %v601 = vpop.f32.mrb[0].mxu0
    %v602 = vpop.f32.mrb[0].mxu0
    %v603 = vadd.f32 0.0, %v602
    %v604 = vpop.f32.mrb[0].mxu0
    %605 = vmatprep.mubr.bf16.mxu0 0
    %606 = vmatmul.mubr.bf16.gmra.mrb[0].mxu0 %v468
    %v607 = vpop.f32.mrb[0].mxu0
    %v608 = vadd.f32 0.0, %v607
    %v609 = vpop.f32.mrb[0].mxu0
    %v610 = vpop.f32.mrb[0].mxu0
    %v611 = vadd.f32 0.0, %v610
    %v612 = vpop.f32.mrb[0].mxu0
    %613 = vdwg.mxu0
    %v614 = vpack.c.bf16 %v555, %v552
    %v615 = vpack.c.bf16 %v563, %v560
    %v616 = vpack.c.bf16 %v571, %v568
    %v617 = vpack.c.bf16 %v579, %v576
    %v618 = vpack.c.bf16 %v587, %v584
    %v619 = vpack.c.bf16 %v595, %v592
    %v620 = vpack.c.bf16 %v603, %v600
    %v621 = vpack.c.bf16 %v611, %v608
    %622 = vst [vmem:[#allocation2] sm:$0xff] %v614
    %623 = vst [vmem:[#allocation2 + $0x8] sm:$0xff] %v615
    %624 = vst [vmem:[#allocation2 + $0x10] sm:$0xff] %v616
    %625 = vst [vmem:[#allocation2 + $0x18] sm:$0xff] %v617
    %626 = vst [vmem:[#allocation2 + $0x20] sm:$0xff] %v618
    %627 = vst [vmem:[#allocation2 + $0x28] sm:$0xff] %v619
    %628 = vst [vmem:[#allocation2 + $0x30] sm:$0xff] %v620
    %629 = vst [vmem:[#allocation2 + $0x38] sm:$0xff] %v621
  $region29: #{_gcn_forward.1} parent=0 // pred_fallthru
    _
  %s630 = smul.u32 0, 128
  %s631 = sshra.s32 %s630, 3
  %s632 = sand.u32 %s630, 7
  %s633 = smul.addr %s631, 4
  %s634 = scalar_lea.vmem %s0, %s633
  %v635 = vld [vmem:[%s634] sm:$0xf]
  %v636 = vld [vmem:[%s634 + $0x4] sm:$0xf]
  %v637 = vld [vmem:[%s634 + $0x8] sm:$0xf]
  %v638 = vld [vmem:[%s634 + $0xc] sm:$0xf]
  %v639 = vld [vmem:[%s634 + $0x10] sm:$0xf]
  %v640 = vld [vmem:[%s634 + $0x14] sm:$0xf]
  %v641 = vld [vmem:[%s634 + $0x18] sm:$0xf]
  %v642 = vld [vmem:[%s634 + $0x1c] sm:$0xf]
  %v643 = vld [vmem:[%s634 + $0x20] sm:$0xf]
  %v644 = vld [vmem:[%s634 + $0x24] sm:$0xf]
  %v645 = vld [vmem:[%s634 + $0x28] sm:$0xf]
  %v646 = vld [vmem:[%s634 + $0x2c] sm:$0xf]
  %v647 = vld [vmem:[%s634 + $0x30] sm:$0xf]
  %v648 = vld [vmem:[%s634 + $0x34] sm:$0xf]
  %v649 = vld [vmem:[%s634 + $0x38] sm:$0xf]
  %v650 = vld [vmem:[%s634 + $0x3c] sm:$0xf]
  %v651 = vld [vmem:[#allocation2] sm:$0xff]
  %v652 = vld [vmem:[#allocation2 + $0x8] sm:$0xff]
  %v653 = vld [vmem:[#allocation2 + $0x10] sm:$0xff]
  %v654 = vld [vmem:[#allocation2 + $0x18] sm:$0xff]
  %v655 = vld [vmem:[#allocation2 + $0x20] sm:$0xff]
  %v656 = vld [vmem:[#allocation2 + $0x28] sm:$0xff]
  %v657 = vld [vmem:[#allocation2 + $0x30] sm:$0xff]
  %v658 = vld [vmem:[#allocation2 + $0x38] sm:$0xff]
  %v659 = vld [vmem:[%s5] sm:$0x1]
  %v661 = vlaneseq
  %v662 = vshrl.u32 %v661, 7
  %v663 = vsub.s32 0, %v662
  %v664 = vrot.slane %v659, %v663
  %v682 = vunpack.c.l.b16 %v635
  %v683 = vunpack.c.l.b16 %v636
  %v684 = vunpack.c.l.b16 %v637
  %v685 = vunpack.c.l.b16 %v638
  %v686 = vunpack.c.l.b16 %v639
  %v687 = vunpack.c.l.b16 %v640
  %v688 = vunpack.c.l.b16 %v641
  %v689 = vunpack.c.l.b16 %v642
  %v690 = vunpack.c.l.b16 %v643
  %v691 = vunpack.c.l.b16 %v644
  %v692 = vunpack.c.l.b16 %v645
  %v693 = vunpack.c.l.b16 %v646
  %v694 = vunpack.c.l.b16 %v647
  %v695 = vunpack.c.l.b16 %v648
  %v696 = vunpack.c.l.b16 %v649
  %v697 = vunpack.c.l.b16 %v650
  %v698 = vpack.c.b16 %v683, %v682
  %v699 = vpack.c.b16 %v685, %v684
  %v700 = vpack.c.b16 %v687, %v686
  %v701 = vpack.c.b16 %v689, %v688
  %v702 = vpack.c.b16 %v691, %v690
  %v703 = vpack.c.b16 %v693, %v692
  %v704 = vpack.c.b16 %v695, %v694
  %v705 = vpack.c.b16 %v697, %v696
  %714 = vmatprep.subr.bf16.mxu0 0
  %715 = vmatpush1.bf16.msra.mxu0 %v651
  %716 = vmatprep.subr.bf16.mxu0 0
  %717 = vmatpush1.bf16.msra.mxu0 %v652
  %718 = vmatprep.subr.bf16.mxu0 0
  %719 = vmatpush1.bf16.msra.mxu0 %v653
  %720 = vmatprep.subr.bf16.mxu0 0
  %721 = vmatpush1.bf16.msra.mxu0 %v654
  %722 = vmatprep.subr.bf16.mxu0 0
  %723 = vmatpush1.bf16.msra.mxu0 %v655
  %724 = vmatprep.subr.bf16.mxu0 0
  %725 = vmatpush1.bf16.msra.mxu0 %v656
  %726 = vmatprep.subr.bf16.mxu0 0
  %727 = vmatpush1.bf16.msra.mxu0 %v657
  %728 = vmatprep.subr.bf16.mxu0 0
  %729 = vmatpush1.bf16.msra.mxu0 %v658
  %730 = vmatprep.subr.bf16.mxu0 0
  %731 = vmatpush1.bf16.msra.mxu0 0
  %732 = vmatprep.subr.bf16.mxu0 0
  %733 = vmatpush1.bf16.msra.mxu0 0
  %734 = vmatprep.subr.bf16.mxu0 0
  %735 = vmatpush1.bf16.msra.mxu0 0
  %736 = vmatprep.subr.bf16.mxu0 0
  %737 = vmatpush1.bf16.msra.mxu0 0
  %738 = vmatprep.subr.bf16.mxu0 0
  %739 = vmatpush1.bf16.msra.mxu0 0
  %740 = vmatprep.subr.bf16.mxu0 0
  %741 = vmatpush1.bf16.msra.mxu0 0
  %742 = vmatprep.subr.bf16.mxu0 0
  %743 = vmatpush1.bf16.msra.mxu0 0
  %744 = vmatprep.subr.bf16.mxu0 0
  %745 = vmatpush1.bf16.msra.mxu0 0
  %746 = vmatprep.mubr.bf16.mxu0 0
  %747 = vmatmul.mubr.bf16.gmra.mrb[0].mxu0 %v698
  %v748 = vpop.f32.mrb[0].mxu0
  %v749 = vadd.f32 %v664, %v748
  %v750 = vpop.f32.mrb[0].mxu0
  %v751 = vpop.f32.mrb[0].mxu0
  %v752 = vadd.f32 %v664, %v751
  %v753 = vpop.f32.mrb[0].mxu0
  %754 = vmatprep.mubr.bf16.mxu0 0
  %755 = vmatmul.mubr.bf16.gmra.mrb[0].mxu0 %v699
  %v756 = vpop.f32.mrb[0].mxu0
  %v757 = vadd.f32 %v664, %v756
  %v758 = vpop.f32.mrb[0].mxu0
  %v759 = vpop.f32.mrb[0].mxu0
  %v760 = vadd.f32 %v664, %v759
  %v761 = vpop.f32.mrb[0].mxu0
  %762 = vmatprep.mubr.bf16.mxu0 0
  %763 = vmatmul.mubr.bf16.gmra.mrb[0].mxu0 %v700
  %v764 = vpop.f32.mrb[0].mxu0
  %v765 = vadd.f32 %v664, %v764
  %v766 = vpop.f32.mrb[0].mxu0
  %v767 = vpop.f32.mrb[0].mxu0
  %v768 = vadd.f32 %v664, %v767
  %v769 = vpop.f32.mrb[0].mxu0
  %770 = vmatprep.mubr.bf16.mxu0 0
  %771 = vmatmul.mubr.bf16.gmra.mrb[0].mxu0 %v701
  %v772 = vpop.f32.mrb[0].mxu0
  %v773 = vadd.f32 %v664, %v772
  %v774 = vpop.f32.mrb[0].mxu0
  %v775 = vpop.f32.mrb[0].mxu0
  %v776 = vadd.f32 %v664, %v775
  %v777 = vpop.f32.mrb[0].mxu0
  %778 = vmatprep.mubr.bf16.mxu0 0
  %779 = vmatmul.mubr.bf16.gmra.mrb[0].mxu0 %v702
  %v780 = vpop.f32.mrb[0].mxu0
  %v781 = vadd.f32 %v664, %v780
  %v782 = vpop.f32.mrb[0].mxu0
  %v783 = vpop.f32.mrb[0].mxu0
  %v784 = vadd.f32 %v664, %v783
  %v785 = vpop.f32.mrb[0].mxu0
  %786 = vmatprep.mubr.bf16.mxu0 0
  %787 = vmatmul.mubr.bf16.gmra.mrb[0].mxu0 %v703
  %v788 = vpop.f32.mrb[0].mxu0
  %v789 = vadd.f32 %v664, %v788
  %v790 = vpop.f32.mrb[0].mxu0
  %v791 = vpop.f32.mrb[0].mxu0
  %v792 = vadd.f32 %v664, %v791
  %v793 = vpop.f32.mrb[0].mxu0
  %794 = vmatprep.mubr.bf16.mxu0 0
  %795 = vmatmul.mubr.bf16.gmra.mrb[0].mxu0 %v704
  %v796 = vpop.f32.mrb[0].mxu0
  %v797 = vadd.f32 %v664, %v796
  %v798 = vpop.f32.mrb[0].mxu0
  %v799 = vpop.f32.mrb[0].mxu0
  %v800 = vadd.f32 %v664, %v799
  %v801 = vpop.f32.mrb[0].mxu0
  %802 = vmatprep.mubr.bf16.mxu0 0
  %803 = vmatmul.mubr.bf16.gmra.mrb[0].mxu0 %v705
  %v804 = vpop.f32.mrb[0].mxu0
  %v805 = vadd.f32 %v664, %v804
  %v806 = vpop.f32.mrb[0].mxu0
  %v807 = vpop.f32.mrb[0].mxu0
  %v808 = vadd.f32 %v664, %v807
  %v809 = vpop.f32.mrb[0].mxu0
  %810 = vdwg.mxu0
  %811 = vst [vmem:[%s6] sm:$0xff] %v749
  %812 = vst [vmem:[%s6 + $0x8] sm:$0xff] %v752
  %813 = vst [vmem:[%s6 + $0x10] sm:$0xff] %v757
  %814 = vst [vmem:[%s6 + $0x18] sm:$0xff] %v760
  %815 = vst [vmem:[%s6 + $0x20] sm:$0xff] %v765
  %816 = vst [vmem:[%s6 + $0x28] sm:$0xff] %v768
  %817 = vst [vmem:[%s6 + $0x30] sm:$0xff] %v773
  %818 = vst [vmem:[%s6 + $0x38] sm:$0xff] %v776
  %819 = vst [vmem:[%s6 + $0x40] sm:$0xff] %v781
  %820 = vst [vmem:[%s6 + $0x48] sm:$0xff] %v784
  %821 = vst [vmem:[%s6 + $0x50] sm:$0xff] %v789
  %822 = vst [vmem:[%s6 + $0x58] sm:$0xff] %v792
  %823 = vst [vmem:[%s6 + $0x60] sm:$0xff] %v797
  %824 = vst [vmem:[%s6 + $0x68] sm:$0xff] %v800
  %825 = vst [vmem:[%s6 + $0x70] sm:$0xff] %v805
  %826 = vst [vmem:[%s6 + $0x78] sm:$0xff] %v808
  // Predicated region
  $region30: #{_gcn_forward.1} parent=0 // pred_check
    _
  $region31: #{_gcn_forward.1} parent=0 // pred_check_branch
    %828 = sbr.rel (0) target = $region33
  $region32: #{_gcn_forward.1} parent=0 // pred_region
    _
  $region33: #{_gcn_forward.1} parent=0 // pred_fallthru
    _
  // Predicated region
  $region34: #{_gcn_forward.1} parent=0 // pred_check
    _
  $region35: #{_gcn_forward.1} parent=0 // pred_check_branch
    %830 = sbr.rel (0) target = $region37
  $region36: #{_gcn_forward.1} parent=0 // pred_region
    _
  $region37: #{_gcn_forward.1} parent=0 // pred_fallthru
    _

</llo_original>
